<compile_context>
chip_gen: v7x
topology: tpu7x:2x2x1
jax: 0.10.0
libtpu: 0.0.40
codegen_flags: <defaults>
</compile_context>

<pallas_src>
import functools

import jax
import jax.numpy as jnp
from jax.experimental import pallas as pl
from jax.experimental.pallas import tpu as pltpu


def _round_up(x: int, m: int) -> int:
    return ((x + m - 1) // m) * m


def projmod_kernel(x_ref, w1_ref, b1_ref, w2_ref, b2_ref, o_ref):
    # fc1 in f32 (K = n_features is small, full precision is ~free), then
    # bias + sigmoid in f32.
    x = x_ref[...].astype(jnp.float32)
    h = jnp.dot(x, w1_ref[...], preferred_element_type=jnp.float32)
    h = jax.nn.sigmoid(h + b1_ref[...])
    # fc2: bf16 operands for the MXU, f32 accumulation; bias + sigmoid in f32.
    o = jnp.dot(h.astype(jnp.bfloat16), w2_ref[...],
                preferred_element_type=jnp.float32)
    # Cast to the caller dtype fuses into the store (no post-kernel pass).
    o_ref[...] = jax.nn.sigmoid(o + b2_ref[...]).astype(o_ref.dtype)


def projmod_forward(x, w1, b1, w2, b2, *, tile_b=None):
    """x: [B, n_features]; w1: [n_features, 512]; b1: [1, 512];
    w2: [512, watermark_size]; b2: [1, watermark_size].
    Weights are stored [in, out] (transposed vs PyTorch's [out, in])."""
    B, n_features = x.shape
    hidden = w1.shape[1]
    wm = w2.shape[1]
    out_dtype = x.dtype

    # Tile selection:
    #  - B <= 512: one grid step (no per-step pipeline overhead), rows rounded
    #    to 16 for clean bf16 sublane packing.
    #  - B  > 512: 512-row tiles -> multiple of 256 (MXU M on v6e/v7x),
    #    grid length >= 2 (feeds both v7x TensorCores), VMEM-safe everywhere.
    if tile_b is None:
        tile_b = _round_up(B, 16) if B <= 512 else 512
    b_pad = _round_up(B, tile_b)
    if b_pad != B:
        x = jnp.pad(x, ((0, b_pad - B), (0, 0)))

    # Resident weights: w1/b1/b2 in f32, w2 in bf16 (fc2 MXU operand).
    w1_f32 = w1.astype(jnp.float32)
    b1_f32 = b1.astype(jnp.float32).reshape(1, hidden)
    w2_bf = w2.astype(jnp.bfloat16)
    b2_f32 = b2.astype(jnp.float32).reshape(1, wm)

    grid = (b_pad // tile_b,)

    itemsize = jnp.dtype(out_dtype).itemsize
    cost = pl.CostEstimate(
        flops=2 * b_pad * (n_features * hidden + hidden * wm),
        transcendentals=b_pad * (hidden + wm),
        bytes_accessed=(b_pad * n_features * itemsize      # x
                        + b_pad * wm * itemsize            # out
                        + n_features * hidden * 4 + hidden * 4   # w1, b1
                        + hidden * wm * 2 + wm * 4),             # w2, b2
    )

    out = pl.pallas_call(
        projmod_kernel,
        out_shape=jax.ShapeDtypeStruct((b_pad, wm), out_dtype),
        grid_spec=pltpu.PrefetchScalarGridSpec(
            num_scalar_prefetch=0,
            grid=grid,
            in_specs=[
                pl.BlockSpec((tile_b, n_features), lambda i: (i, 0)),  # x tile
                pl.BlockSpec((n_features, hidden), lambda i: (0, 0)),  # w1 (resident)
                pl.BlockSpec((1, hidden), lambda i: (0, 0)),           # b1
                pl.BlockSpec((hidden, wm), lambda i: (0, 0)),          # w2 (resident)
                pl.BlockSpec((1, wm), lambda i: (0, 0)),               # b2
            ],
            out_specs=pl.BlockSpec((tile_b, wm), lambda i: (i, 0)),
        ),
        compiler_params=pltpu.CompilerParams(
            dimension_semantics=("parallel",)),
        cost_estimate=cost,
    )(x, w1_f32, b1_f32, w2_bf, b2_f32)

    # Strip batch padding only (no lane padding / dtype cast needed anymore).
    return out[:B] if b_pad != B else out


def reference_forward(x, w1, b1, w2, b2):
    h = jax.nn.sigmoid(x @ w1 + b1)
    return jax.nn.sigmoid(h @ w2 + b2)


if __name__ == "__main__":
    # config: n_features=32, watermark_size=16 (small, forward-consistent)
    n_features = 32
    hidden = 512
    watermark_size = 16
    batch = 16

    key = jax.random.PRNGKey(0)
    kx, kw1, kb1, kw2, kb2 = jax.random.split(key, 5)

    x = jax.random.normal(kx, (batch, n_features), dtype=jnp.float32)

    # Deterministic init mimicking nn.Linear's uniform(-1/sqrt(in), 1/sqrt(in)).
    # Stored as [in, out] (transposed vs PyTorch's [out, in]) for the kernel.
    lim1 = 1.0 / jnp.sqrt(jnp.float32(n_features))
    w1 = jax.random.uniform(kw1, (n_features, hidden), jnp.float32, -lim1, lim1)
    b1 = jax.random.uniform(kb1, (1, hidden), jnp.float32, -lim1, lim1)

    lim2 = 1.0 / jnp.sqrt(jnp.float32(hidden))
    w2 = jax.random.uniform(kw2, (hidden, watermark_size), jnp.float32, -lim2, lim2)
    b2 = jax.random.uniform(kb2, (1, watermark_size), jnp.float32, -lim2, lim2)

    fwd = jax.jit(functools.partial(projmod_forward))
    out = jax.block_until_ready(fwd(x, w1, b1, w2, b2))

    ref = reference_forward(x, w1, b1, w2, b2)
    assert out.shape == (batch, watermark_size)
    # fc1 runs in f32; only fc2 uses bf16 operands (f32 accumulate), so the
    # error budget is small, but keep some slack for TPU transcendentals.
    assert jnp.allclose(out, ref, atol=2e-2, rtol=2e-2), (
        float(jnp.max(jnp.abs(out - ref))))

    print("KERNEL_OK")
</pallas_src>

<mosaic_0001>
module attributes {stable_mosaic.version = 11 : i64} {
  func.func @projmod_kernel(%arg0: i32, %arg1: memref<16x32xf32, #tpu.memory_space<vmem>>, %arg2: memref<32x512xf32, #tpu.memory_space<vmem>>, %arg3: memref<1x512xf32, #tpu.memory_space<vmem>>, %arg4: memref<512x16xbf16, #tpu.memory_space<vmem>>, %arg5: memref<1x16xf32, #tpu.memory_space<vmem>>, %arg6: memref<16x16xf32, #tpu.memory_space<vmem>>) attributes {dimension_semantics = [#tpu.dimension_semantics<parallel>], iteration_bounds = array<i64: 1>, scalar_prefetch = 0 : i64, scratch_operands = 0 : i64, tpu.core_type = #tpu.core_type<tc>, window_params = [{transform_indices = @transform_0, window_bounds = array<i64: 16, 32>}, {pipeline_mode = #tpu.pipeline_mode<synchronous>, transform_indices = @transform_1, window_bounds = array<i64: 32, 512>}, {pipeline_mode = #tpu.pipeline_mode<synchronous>, transform_indices = @transform_2, window_bounds = array<i64: 1, 512>}, {pipeline_mode = #tpu.pipeline_mode<synchronous>, transform_indices = @transform_3, window_bounds = array<i64: 512, 16>}, {pipeline_mode = #tpu.pipeline_mode<synchronous>, transform_indices = @transform_4, window_bounds = array<i64: 1, 16>}, {transform_indices = @transform_5, window_bounds = array<i64: 16, 16>}]} {
    %c0 = arith.constant 0 : index
    %c0_0 = arith.constant 0 : index
    %0 = vector.load %arg1[%c0, %c0_0] : memref<16x32xf32, #tpu.memory_space<vmem>>, vector<16x32xf32>
    %c0_1 = arith.constant 0 : index
    %c0_2 = arith.constant 0 : index
    %1 = vector.load %arg2[%c0_1, %c0_2] : memref<32x512xf32, #tpu.memory_space<vmem>>, vector<32x512xf32>
    %cst = arith.constant dense<0.000000e+00> : vector<16x512xf32>
    %2 = tpu.matmul %0, %1, %cst {dimension_numbers = #tpu.dot_dimension_numbers<[1], [0], [0], [1], [0, 0, 1, 1], [], []>} : vector<16x32xf32>, vector<32x512xf32>, vector<16x512xf32> -> vector<16x512xf32>
    %c0_3 = arith.constant 0 : index
    %c0_4 = arith.constant 0 : index
    %3 = vector.load %arg3[%c0_3, %c0_4] : memref<1x512xf32, #tpu.memory_space<vmem>>, vector<1x512xf32>
    %4 = vector.broadcast %3 : vector<1x512xf32> to vector<16x512xf32>
    %5 = arith.addf %2, %4 : vector<16x512xf32>
    %6 = arith.negf %5 : vector<16x512xf32>
    %7 = math.exp %6 : vector<16x512xf32>
    %cst_5 = arith.constant 1.000000e+00 : f32
    %8 = vector.broadcast %cst_5 : f32 to vector<16x512xf32>
    %9 = arith.addf %8, %7 : vector<16x512xf32>
    %10 = arith.divf %8, %9 : vector<16x512xf32>
    %11 = arith.truncf %10 : vector<16x512xf32> to vector<16x512xbf16>
    %c0_6 = arith.constant 0 : index
    %c0_7 = arith.constant 0 : index
    %12 = vector.load %arg4[%c0_6, %c0_7] : memref<512x16xbf16, #tpu.memory_space<vmem>>, vector<512x16xbf16>
    %cst_8 = arith.constant dense<0.000000e+00> : vector<16x16xf32>
    %13 = tpu.matmul %11, %12, %cst_8 {dimension_numbers = #tpu.dot_dimension_numbers<[1], [0], [0], [1], [0, 0, 1, 1], [], []>} : vector<16x512xbf16>, vector<512x16xbf16>, vector<16x16xf32> -> vector<16x16xf32>
    %c0_9 = arith.constant 0 : index
    %c0_10 = arith.constant 0 : index
    %14 = vector.load %arg5[%c0_9, %c0_10] : memref<1x16xf32, #tpu.memory_space<vmem>>, vector<1x16xf32>
    %15 = vector.broadcast %14 : vector<1x16xf32> to vector<16x16xf32>
    %16 = arith.addf %13, %15 : vector<16x16xf32>
    %17 = arith.negf %16 : vector<16x16xf32>
    %18 = math.exp %17 : vector<16x16xf32>
    %cst_11 = arith.constant 1.000000e+00 : f32
    %19 = vector.broadcast %cst_11 : f32 to vector<16x16xf32>
    %20 = arith.addf %19, %18 : vector<16x16xf32>
    %21 = arith.divf %19, %20 : vector<16x16xf32>
    %c0_12 = arith.constant 0 : index
    %c0_13 = arith.constant 0 : index
    %22 = vector.load %arg6[%c0_12, %c0_13] : memref<16x16xf32, #tpu.memory_space<vmem>>, vector<16x16xf32>
    tpu.vector_store %arg6[%c0_12, %c0_13], %21 {strides = array<i32>} : memref<16x16xf32, #tpu.memory_space<vmem>>, vector<16x16xf32>,
    return
  }
  func.func @transform_0(%arg0: i32) -> (i32, i32) {
    %c0_i32 = arith.constant 0 : i32
    %c0_i32_0 = arith.constant 0 : i32
    return %arg0, %c0_i32 : i32, i32
  }
  func.func @transform_1(%arg0: i32) -> (i32, i32) {
    %c0_i32 = arith.constant 0 : i32
    %c0_i32_0 = arith.constant 0 : i32
    %c0_i32_1 = arith.constant 0 : i32
    return %c0_i32, %c0_i32_0 : i32, i32
  }
  func.func @transform_2(%arg0: i32) -> (i32, i32) {
    %c0_i32 = arith.constant 0 : i32
    %c0_i32_0 = arith.constant 0 : i32
    %c0_i32_1 = arith.constant 0 : i32
    return %c0_i32, %c0_i32_0 : i32, i32
  }
  func.func @transform_3(%arg0: i32) -> (i32, i32) {
    %c0_i32 = arith.constant 0 : i32
    %c0_i32_0 = arith.constant 0 : i32
    %c0_i32_1 = arith.constant 0 : i32
    return %c0_i32, %c0_i32_0 : i32, i32
  }
  func.func @transform_4(%arg0: i32) -> (i32, i32) {
    %c0_i32 = arith.constant 0 : i32
    %c0_i32_0 = arith.constant 0 : i32
    %c0_i32_1 = arith.constant 0 : i32
    return %c0_i32, %c0_i32_0 : i32, i32
  }
  func.func @transform_5(%arg0: i32) -> (i32, i32) {
    %c0_i32 = arith.constant 0 : i32
    %c0_i32_0 = arith.constant 0 : i32
    return %arg0, %c0_i32 : i32, i32
  }
}

</mosaic_0001>

<llo_original>
// kernel: projmod_forward.1
$region0: #{projmod_forward.1}
  #allocation0 [shape = 'u32[]', space=smem, size = 0x4, offset = 0x4, fixed_abs, tag = 'smem constant byte address 0x4 - core index']
  #allocation1 [shape = 'u32[144,128]{1,0:T(1,128)}', space=vmem, size = 0x12000, scoped, tag = 'internal scratch']
  %s0 = inlined_call_operand.vmem [shape: f32[16,32], index: 0, kind: input, shape index: {}]
  %s1 = inlined_call_operand.vmem [shape: f32[32,512], index: 1, kind: input, shape index: {}]
  %s2 = inlined_call_operand.vmem [shape: f32[1,512], index: 2, kind: input, shape index: {}]
  %s3 = inlined_call_operand.vmem [shape: bf16[512,16], index: 3, kind: input, shape index: {}]
  %s4 = inlined_call_operand.vmem [shape: f32[1,16], index: 4, kind: input, shape index: {}]
  %s5 = inlined_call_operand.hbm [shape: f32[16,16], index: 5, kind: output, shape index: {}]
  %s6 = sld [smem:[#allocation0]]
  $region30: #{projmod_forward.1} parent=0
    _
  %s8 = ssub.s32 1, %s6
  %s9 = scalar_select 0, %s8, %s6
  $region1: #{projmod_forward.1} parent=0
    #allocation2 [shape = 'u8[8192]{0}', space=vmem, size = 0x2000, scoped, tag = 'output window, operand 0, single buffered']
    #allocation3 [shape = 's32[1]{0}', space=sflag, size = 0x4, scoped, tag = 'scoped memory for projmod_forward.1']
    %10 = vsyncpa [#allocation3], 0
    // Predicated region
    $region2: #{projmod_forward.1} parent=1 // pred_check
      _
    $region3: #{projmod_forward.1} parent=1 // pred_check_branch
      %12 = sbr.rel (0) target = $region5
    $region4: #{projmod_forward.1} parent=1 // pred_region
      _
    $region5: #{projmod_forward.1} parent=1 // pred_fallthru
      _
    // Predicated region
    $region6: #{projmod_forward.1} parent=1 // pred_check
      _
    $region7: #{projmod_forward.1} parent=1 // pred_check_branch
      %14 = sbr.rel (0) target = $region9
    $region8: #{projmod_forward.1} parent=1 // pred_region
      _
    $region9: #{projmod_forward.1} parent=1 // pred_fallthru
      _
    // Predicated region
    $region10: #{projmod_forward.1} parent=1 // pred_check
      _
    $region11: #{projmod_forward.1} parent=1 // pred_check_branch
      %16 = sbr.rel (0) target = $region13
    $region12: #{projmod_forward.1} parent=1 // pred_region
      _
    $region13: #{projmod_forward.1} parent=1 // pred_fallthru
      _
    // Predicated region
    $region14: #{projmod_forward.1} parent=1 // pred_check
      _
    $region15: #{projmod_forward.1} parent=1 // pred_check_branch
      %18 = sbr.rel (0) target = $region17
    $region16: #{projmod_forward.1} parent=1 // pred_region
      _
    $region17: #{projmod_forward.1} parent=1 // pred_fallthru
      _
    // Predicated region
    $region18: #{projmod_forward.1} parent=1 // pred_check
      _
    $region19: #{projmod_forward.1} parent=1 // pred_check_branch
      %20 = sbr.rel (0) target = $region21
    $region20: #{projmod_forward.1} parent=1 // pred_region
      _
    $region21: #{projmod_forward.1} parent=1 // pred_fallthru
      _
    %v22 = vld [vmem:[%s0] sm:$0xff]
    %v23 = vld [vmem:[%s0 + $0x8] sm:$0xff]
    %v24 = vld [vmem:[%s1] sm:$0xff]
    %v25 = vld [vmem:[%s1 + $0x8] sm:$0xff]
    %v26 = vld [vmem:[%s1 + $0x10] sm:$0xff]
    %v27 = vld [vmem:[%s1 + $0x18] sm:$0xff]
    %v28 = vld [vmem:[%s1 + $0x20] sm:$0xff]
    %v29 = vld [vmem:[%s1 + $0x28] sm:$0xff]
    %v30 = vld [vmem:[%s1 + $0x30] sm:$0xff]
    %v31 = vld [vmem:[%s1 + $0x38] sm:$0xff]
    %v32 = vld [vmem:[%s1 + $0x40] sm:$0xff]
    %v33 = vld [vmem:[%s1 + $0x48] sm:$0xff]
    %v34 = vld [vmem:[%s1 + $0x50] sm:$0xff]
    %v35 = vld [vmem:[%s1 + $0x58] sm:$0xff]
    %v36 = vld [vmem:[%s1 + $0x60] sm:$0xff]
    %v37 = vld [vmem:[%s1 + $0x68] sm:$0xff]
    %v38 = vld [vmem:[%s1 + $0x70] sm:$0xff]
    %v39 = vld [vmem:[%s1 + $0x78] sm:$0xff]
    %v40 = vld [vmem:[%s2] sm:$0xf]
    %v42 = vlaneseq
    %v43 = vshrl.u32 %v42, 7
    %v44 = vsub.s32 0, %v43
    %v45 = vrot.slane %v40, %v44
    %v46 = vlaneseq
    %v47 = vshrl.u32 %v46, 7
    %v48 = vsub.s32 1, %v47
    %v49 = vrot.slane %v40, %v48
    %v50 = vlaneseq
    %v51 = vshrl.u32 %v50, 7
    %v52 = vsub.s32 2, %v51
    %v53 = vrot.slane %v40, %v52
    %v54 = vlaneseq
    %v55 = vshrl.u32 %v54, 7
    %v56 = vsub.s32 3, %v55
    %v57 = vrot.slane %v40, %v56
    %vm62 = vcmask 261120
    %v64 = vsel %vm62, %v22, 0
    %v67 = vsel %vm62, %v23, 0
    %69 = vmatprep.subr.mxu0 %v25
    %70 = vmatpush1.msra.mxu0 %v24
    %71 = vmatprep.subr.mxu0 %v29
    %72 = vmatpush1.msra.mxu0 %v28
    %73 = vmatprep.subr.mxu0 %v33
    %74 = vmatpush1.msra.mxu0 %v32
    %75 = vmatprep.subr.mxu0 %v37
    %76 = vmatpush1.msra.mxu0 %v36
    %77 = vmatprep.subr.mxu0 0.0
    %78 = vmatpush1.msra.mxu0 0.0
    %79 = vmatprep.subr.mxu0 0.0
    %80 = vmatpush1.msra.mxu0 0.0
    %81 = vmatprep.subr.mxu0 0.0
    %82 = vmatpush1.msra.mxu0 0.0
    %83 = vmatprep.subr.mxu0 0.0
    %84 = vmatpush1.msra.mxu0 0.0
    %85 = vmatprep.subr.mxu0 0.0
    %86 = vmatpush1.msra.mxu0 0.0
    %87 = vmatprep.subr.mxu0 0.0
    %88 = vmatpush1.msra.mxu0 0.0
    %89 = vmatprep.subr.mxu0 0.0
    %90 = vmatpush1.msra.mxu0 0.0
    %91 = vmatprep.subr.mxu0 0.0
    %92 = vmatpush1.msra.mxu0 0.0
    %93 = vmatprep.subr.mxu0 0.0
    %94 = vmatpush1.msra.mxu0 0.0
    %95 = vmatprep.subr.mxu0 0.0
    %96 = vmatpush1.msra.mxu0 0.0
    %97 = vmatprep.subr.mxu0 0.0
    %98 = vmatpush1.msra.mxu0 0.0
    %99 = vmatprep.subr.mxu0 0.0
    %100 = vmatpush1.msra.mxu0 0.0
    %101 = vmatprep.subr.mxu0 0.0
    %102 = vmatpush1.msra.mxu0 0.0
    %103 = vmatprep.subr.mxu0 0.0
    %104 = vmatpush1.msra.mxu0 0.0
    %105 = vmatprep.subr.mxu0 0.0
    %106 = vmatpush1.msra.mxu0 0.0
    %107 = vmatprep.subr.mxu0 0.0
    %108 = vmatpush1.msra.mxu0 0.0
    %109 = vmatprep.subr.mxu0 0.0
    %110 = vmatpush1.msra.mxu0 0.0
    %111 = vmatprep.subr.mxu0 0.0
    %112 = vmatpush1.msra.mxu0 0.0
    %113 = vmatprep.subr.mxu0 0.0
    %114 = vmatpush1.msra.mxu0 0.0
    %115 = vmatprep.subr.mxu0 0.0
    %116 = vmatpush1.msra.mxu0 0.0
    %117 = vmatprep.subr.mxu0 0.0
    %118 = vmatpush1.msra.mxu0 0.0
    %119 = vmatprep.subr.mxu0 0.0
    %120 = vmatpush1.msra.mxu0 0.0
    %121 = vmatprep.subr.mxu0 0.0
    %122 = vmatpush1.msra.mxu0 0.0
    %123 = vmatprep.subr.mxu0 0.0
    %124 = vmatpush1.msra.mxu0 0.0
    %125 = vmatprep.subr.mxu0 0.0
    %126 = vmatpush1.msra.mxu0 0.0
    %127 = vmatprep.subr.mxu0 0.0
    %128 = vmatpush1.msra.mxu0 0.0
    %129 = vmatprep.subr.mxu0 0.0
    %130 = vmatpush1.msra.mxu0 0.0
    %131 = vmatprep.subr.mxu0 0.0
    %132 = vmatpush1.msra.mxu0 0.0
    %133 = vmatprep.mubr.f32.mxu0 0.0
    %134 = vmatmul.mubr.f32.gmra.mrb[0].mxu0 %v64
    %v135 = vpop.f32.mrb[0].mxu0
    %v136 = vadd.f32 %v45, %v135
    %v137 = vpop.f32.mrb[0].mxu0
    %v138 = vadd.f32 %v49, %v137
    %139 = vmatprep.mubr.f32.mxu0 0.0
    %140 = vmatmul.mubr.f32.gmra.mrb[0].mxu0 %v67
    %v141 = vpop.f32.mrb[0].mxu0
    %v142 = vadd.f32 %v45, %v141
    %v143 = vpop.f32.mrb[0].mxu0
    %v144 = vadd.f32 %v49, %v143
    %145 = vdwg.mxu0
    %146 = vmatprep.subr.mxu0 %v27
    %147 = vmatpush1.msra.mxu0 %v26
    %148 = vmatprep.subr.mxu0 %v31
    %149 = vmatpush1.msra.mxu0 %v30
    %150 = vmatprep.subr.mxu0 %v35
    %151 = vmatpush1.msra.mxu0 %v34
    %152 = vmatprep.subr.mxu0 %v39
    %153 = vmatpush1.msra.mxu0 %v38
    %154 = vmatprep.subr.mxu0 0.0
    %155 = vmatpush1.msra.mxu0 0.0
    %156 = vmatprep.subr.mxu0 0.0
    %157 = vmatpush1.msra.mxu0 0.0
    %158 = vmatprep.subr.mxu0 0.0
    %159 = vmatpush1.msra.mxu0 0.0
    %160 = vmatprep.subr.mxu0 0.0
    %161 = vmatpush1.msra.mxu0 0.0
    %162 = vmatprep.subr.mxu0 0.0
    %163 = vmatpush1.msra.mxu0 0.0
    %164 = vmatprep.subr.mxu0 0.0
    %165 = vmatpush1.msra.mxu0 0.0
    %166 = vmatprep.subr.mxu0 0.0
    %167 = vmatpush1.msra.mxu0 0.0
    %168 = vmatprep.subr.mxu0 0.0
    %169 = vmatpush1.msra.mxu0 0.0
    %170 = vmatprep.subr.mxu0 0.0
    %171 = vmatpush1.msra.mxu0 0.0
    %172 = vmatprep.subr.mxu0 0.0
    %173 = vmatpush1.msra.mxu0 0.0
    %174 = vmatprep.subr.mxu0 0.0
    %175 = vmatpush1.msra.mxu0 0.0
    %176 = vmatprep.subr.mxu0 0.0
    %177 = vmatpush1.msra.mxu0 0.0
    %178 = vmatprep.subr.mxu0 0.0
    %179 = vmatpush1.msra.mxu0 0.0
    %180 = vmatprep.subr.mxu0 0.0
    %181 = vmatpush1.msra.mxu0 0.0
    %182 = vmatprep.subr.mxu0 0.0
    %183 = vmatpush1.msra.mxu0 0.0
    %184 = vmatprep.subr.mxu0 0.0
    %185 = vmatpush1.msra.mxu0 0.0
    %186 = vmatprep.subr.mxu0 0.0
    %187 = vmatpush1.msra.mxu0 0.0
    %188 = vmatprep.subr.mxu0 0.0
    %189 = vmatpush1.msra.mxu0 0.0
    %190 = vmatprep.subr.mxu0 0.0
    %191 = vmatpush1.msra.mxu0 0.0
    %192 = vmatprep.subr.mxu0 0.0
    %193 = vmatpush1.msra.mxu0 0.0
    %194 = vmatprep.subr.mxu0 0.0
    %195 = vmatpush1.msra.mxu0 0.0
    %196 = vmatprep.subr.mxu0 0.0
    %197 = vmatpush1.msra.mxu0 0.0
    %198 = vmatprep.subr.mxu0 0.0
    %199 = vmatpush1.msra.mxu0 0.0
    %200 = vmatprep.subr.mxu0 0.0
    %201 = vmatpush1.msra.mxu0 0.0
    %202 = vmatprep.subr.mxu0 0.0
    %203 = vmatpush1.msra.mxu0 0.0
    %204 = vmatprep.subr.mxu0 0.0
    %205 = vmatpush1.msra.mxu0 0.0
    %206 = vmatprep.subr.mxu0 0.0
    %207 = vmatpush1.msra.mxu0 0.0
    %208 = vmatprep.subr.mxu0 0.0
    %209 = vmatpush1.msra.mxu0 0.0
    %210 = vmatprep.mubr.f32.mxu0 0.0
    %211 = vmatmul.mubr.f32.gmra.mrb[0].mxu0 %v64
    %v212 = vpop.f32.mrb[0].mxu0
    %v213 = vadd.f32 %v53, %v212
    %v214 = vpop.f32.mrb[0].mxu0
    %v215 = vadd.f32 %v57, %v214
    %216 = vmatprep.mubr.f32.mxu0 0.0
    %217 = vmatmul.mubr.f32.gmra.mrb[0].mxu0 %v67
    %v218 = vpop.f32.mrb[0].mxu0
    %v219 = vadd.f32 %v53, %v218
    %v220 = vpop.f32.mrb[0].mxu0
    %v221 = vadd.f32 %v57, %v220
    %222 = vdwg.mxu0
    %v223 = vxor.u32 %v136, 2147483648
    %v224 = vxor.u32 %v138, 2147483648
    %v225 = vxor.u32 %v213, 2147483648
    %v226 = vxor.u32 %v215, 2147483648
    %v227 = vxor.u32 %v142, 2147483648
    %v228 = vxor.u32 %v144, 2147483648
    %v229 = vxor.u32 %v219, 2147483648
    %v230 = vxor.u32 %v221, 2147483648
    %v231 = vmul.f32 %v223, 1.442695
    %v232 = vpow.pop %v231
    %v233 = vmul.f32 %v224, 1.442695
    %v234 = vpow.pop %v233
    %v235 = vmul.f32 %v225, 1.442695
    %v236 = vpow.pop %v235
    %v237 = vmul.f32 %v226, 1.442695
    %v238 = vpow.pop %v237
    %v239 = vmul.f32 %v227, 1.442695
    %v240 = vpow.pop %v239
    %v241 = vmul.f32 %v228, 1.442695
    %v242 = vpow.pop %v241
    %v243 = vmul.f32 %v229, 1.442695
    %v244 = vpow.pop %v243
    %v245 = vmul.f32 %v230, 1.442695
    %v246 = vpow.pop %v245
    %v247 = vadd.f32 %v232, 1.0
    %v248 = vadd.f32 %v234, 1.0
    %v249 = vadd.f32 %v236, 1.0
    %v250 = vadd.f32 %v238, 1.0
    %v251 = vadd.f32 %v240, 1.0
    %v252 = vadd.f32 %v242, 1.0
    %v253 = vadd.f32 %v244, 1.0
    %v254 = vadd.f32 %v246, 1.0
    %v255 = vrcp.pop %v247
    %v256 = vmul.f32 1.0, %v255
    %v257 = vrcp.pop %v248
    %v258 = vmul.f32 1.0, %v257
    %v259 = vrcp.pop %v249
    %v260 = vmul.f32 1.0, %v259
    %v261 = vrcp.pop %v250
    %v262 = vmul.f32 1.0, %v261
    %v263 = vrcp.pop %v251
    %v264 = vmul.f32 1.0, %v263
    %v265 = vrcp.pop %v252
    %v266 = vmul.f32 1.0, %v265
    %v267 = vrcp.pop %v253
    %v268 = vmul.f32 1.0, %v267
    %v269 = vrcp.pop %v254
    %v270 = vmul.f32 1.0, %v269
    %v271 = vpack.c.bf16 %v264, %v256
    %v272 = vpack.c.bf16 %v266, %v258
    %v273 = vpack.c.bf16 %v268, %v260
    %v274 = vpack.c.bf16 %v270, %v262
    %v275 = vld [vmem:[%s3] sm:$0xf]
    %v276 = vld [vmem:[%s3 + $0x4] sm:$0xf]
    %v277 = vld [vmem:[%s3 + $0x8] sm:$0xf]
    %v278 = vld [vmem:[%s3 + $0xc] sm:$0xf]
    %v279 = vld [vmem:[%s3 + $0x10] sm:$0xf]
    %v280 = vld [vmem:[%s3 + $0x14] sm:$0xf]
    %v281 = vld [vmem:[%s3 + $0x18] sm:$0xf]
    %v282 = vld [vmem:[%s3 + $0x1c] sm:$0xf]
    %v283 = vld [vmem:[%s3 + $0x20] sm:$0xf]
    %v284 = vld [vmem:[%s3 + $0x24] sm:$0xf]
    %v285 = vld [vmem:[%s3 + $0x28] sm:$0xf]
    %v286 = vld [vmem:[%s3 + $0x2c] sm:$0xf]
    %v287 = vld [vmem:[%s3 + $0x30] sm:$0xf]
    %v288 = vld [vmem:[%s3 + $0x34] sm:$0xf]
    %v289 = vld [vmem:[%s3 + $0x38] sm:$0xf]
    %v290 = vld [vmem:[%s3 + $0x3c] sm:$0xf]
    %v291 = vld [vmem:[%s3 + $0x40] sm:$0xf]
    %v292 = vld [vmem:[%s3 + $0x44] sm:$0xf]
    %v293 = vld [vmem:[%s3 + $0x48] sm:$0xf]
    %v294 = vld [vmem:[%s3 + $0x4c] sm:$0xf]
    %v295 = vld [vmem:[%s3 + $0x50] sm:$0xf]
    %v296 = vld [vmem:[%s3 + $0x54] sm:$0xf]
    %v297 = vld [vmem:[%s3 + $0x58] sm:$0xf]
    %v298 = vld [vmem:[%s3 + $0x5c] sm:$0xf]
    %v299 = vld [vmem:[%s3 + $0x60] sm:$0xf]
    %v300 = vld [vmem:[%s3 + $0x64] sm:$0xf]
    %v301 = vld [vmem:[%s3 + $0x68] sm:$0xf]
    %v302 = vld [vmem:[%s3 + $0x6c] sm:$0xf]
    %v303 = vld [vmem:[%s3 + $0x70] sm:$0xf]
    %v304 = vld [vmem:[%s3 + $0x74] sm:$0xf]
    %v305 = vld [vmem:[%s3 + $0x78] sm:$0xf]
    %v306 = vld [vmem:[%s3 + $0x7c] sm:$0xf]
    %v307 = vld [vmem:[%s3 + $0x80] sm:$0xf]
    %v308 = vld [vmem:[%s3 + $0x84] sm:$0xf]
    %v309 = vld [vmem:[%s3 + $0x88] sm:$0xf]
    %v310 = vld [vmem:[%s3 + $0x8c] sm:$0xf]
    %v311 = vld [vmem:[%s3 + $0x90] sm:$0xf]
    %v312 = vld [vmem:[%s3 + $0x94] sm:$0xf]
    %v313 = vld [vmem:[%s3 + $0x98] sm:$0xf]
    %v314 = vld [vmem:[%s3 + $0x9c] sm:$0xf]
    %v315 = vld [vmem:[%s3 + $0xa0] sm:$0xf]
    %v316 = vld [vmem:[%s3 + $0xa4] sm:$0xf]
    %v317 = vld [vmem:[%s3 + $0xa8] sm:$0xf]
    %v318 = vld [vmem:[%s3 + $0xac] sm:$0xf]
    %v319 = vld [vmem:[%s3 + $0xb0] sm:$0xf]
    %v320 = vld [vmem:[%s3 + $0xb4] sm:$0xf]
    %v321 = vld [vmem:[%s3 + $0xb8] sm:$0xf]
    %v322 = vld [vmem:[%s3 + $0xbc] sm:$0xf]
    %v323 = vld [vmem:[%s3 + $0xc0] sm:$0xf]
    %v324 = vld [vmem:[%s3 + $0xc4] sm:$0xf]
    %v325 = vld [vmem:[%s3 + $0xc8] sm:$0xf]
    %v326 = vld [vmem:[%s3 + $0xcc] sm:$0xf]
    %v327 = vld [vmem:[%s3 + $0xd0] sm:$0xf]
    %v328 = vld [vmem:[%s3 + $0xd4] sm:$0xf]
    %v329 = vld [vmem:[%s3 + $0xd8] sm:$0xf]
    %v330 = vld [vmem:[%s3 + $0xdc] sm:$0xf]
    %v331 = vld [vmem:[%s3 + $0xe0] sm:$0xf]
    %v332 = vld [vmem:[%s3 + $0xe4] sm:$0xf]
    %v333 = vld [vmem:[%s3 + $0xe8] sm:$0xf]
    %v334 = vld [vmem:[%s3 + $0xec] sm:$0xf]
    %v335 = vld [vmem:[%s3 + $0xf0] sm:$0xf]
    %v336 = vld [vmem:[%s3 + $0xf4] sm:$0xf]
    %v337 = vld [vmem:[%s3 + $0xf8] sm:$0xf]
    %v338 = vld [vmem:[%s3 + $0xfc] sm:$0xf]
    %v339 = vld [vmem:[%s4] sm:$0x1]
    %v341 = vlaneseq
    %v342 = vshrl.u32 %v341, 7
    %v343 = vsub.s32 0, %v342
    %v344 = vrot.slane %v339, %v343
    %v410 = vunpack.c.l.b16 %v275
    %v411 = vunpack.c.l.b16 %v276
    %v412 = vunpack.c.l.b16 %v277
    %v413 = vunpack.c.l.b16 %v278
    %v414 = vunpack.c.l.b16 %v279
    %v415 = vunpack.c.l.b16 %v280
    %v416 = vunpack.c.l.b16 %v281
    %v417 = vunpack.c.l.b16 %v282
    %v418 = vunpack.c.l.b16 %v283
    %v419 = vunpack.c.l.b16 %v284
    %v420 = vunpack.c.l.b16 %v285
    %v421 = vunpack.c.l.b16 %v286
    %v422 = vunpack.c.l.b16 %v287
    %v423 = vunpack.c.l.b16 %v288
    %v424 = vunpack.c.l.b16 %v289
    %v425 = vunpack.c.l.b16 %v290
    %v426 = vunpack.c.l.b16 %v291
    %v427 = vunpack.c.l.b16 %v292
    %v428 = vunpack.c.l.b16 %v293
    %v429 = vunpack.c.l.b16 %v294
    %v430 = vunpack.c.l.b16 %v295
    %v431 = vunpack.c.l.b16 %v296
    %v432 = vunpack.c.l.b16 %v297
    %v433 = vunpack.c.l.b16 %v298
    %v434 = vunpack.c.l.b16 %v299
    %v435 = vunpack.c.l.b16 %v300
    %v436 = vunpack.c.l.b16 %v301
    %v437 = vunpack.c.l.b16 %v302
    %v438 = vunpack.c.l.b16 %v303
    %v439 = vunpack.c.l.b16 %v304
    %v440 = vunpack.c.l.b16 %v305
    %v441 = vunpack.c.l.b16 %v306
    %v442 = vunpack.c.l.b16 %v307
    %v443 = vunpack.c.l.b16 %v308
    %v444 = vunpack.c.l.b16 %v309
    %v445 = vunpack.c.l.b16 %v310
    %v446 = vunpack.c.l.b16 %v311
    %v447 = vunpack.c.l.b16 %v312
    %v448 = vunpack.c.l.b16 %v313
    %v449 = vunpack.c.l.b16 %v314
    %v450 = vunpack.c.l.b16 %v315
    %v451 = vunpack.c.l.b16 %v316
    %v452 = vunpack.c.l.b16 %v317
    %v453 = vunpack.c.l.b16 %v318
    %v454 = vunpack.c.l.b16 %v319
    %v455 = vunpack.c.l.b16 %v320
    %v456 = vunpack.c.l.b16 %v321
    %v457 = vunpack.c.l.b16 %v322
    %v458 = vunpack.c.l.b16 %v323
    %v459 = vunpack.c.l.b16 %v324
    %v460 = vunpack.c.l.b16 %v325
    %v461 = vunpack.c.l.b16 %v326
    %v462 = vunpack.c.l.b16 %v327
    %v463 = vunpack.c.l.b16 %v328
    %v464 = vunpack.c.l.b16 %v329
    %v465 = vunpack.c.l.b16 %v330
    %v466 = vunpack.c.l.b16 %v331
    %v467 = vunpack.c.l.b16 %v332
    %v468 = vunpack.c.l.b16 %v333
    %v469 = vunpack.c.l.b16 %v334
    %v470 = vunpack.c.l.b16 %v335
    %v471 = vunpack.c.l.b16 %v336
    %v472 = vunpack.c.l.b16 %v337
    %v473 = vunpack.c.l.b16 %v338
    %v474 = vpack.c.b16 %v411, %v410
    %v475 = vpack.c.b16 %v413, %v412
    %v476 = vpack.c.b16 %v415, %v414
    %v477 = vpack.c.b16 %v417, %v416
    %v478 = vpack.c.b16 %v419, %v418
    %v479 = vpack.c.b16 %v421, %v420
    %v480 = vpack.c.b16 %v423, %v422
    %v481 = vpack.c.b16 %v425, %v424
    %v482 = vpack.c.b16 %v427, %v426
    %v483 = vpack.c.b16 %v429, %v428
    %v484 = vpack.c.b16 %v431, %v430
    %v485 = vpack.c.b16 %v433, %v432
    %v486 = vpack.c.b16 %v435, %v434
    %v487 = vpack.c.b16 %v437, %v436
    %v488 = vpack.c.b16 %v439, %v438
    %v489 = vpack.c.b16 %v441, %v440
    %v490 = vpack.c.b16 %v443, %v442
    %v491 = vpack.c.b16 %v445, %v444
    %v492 = vpack.c.b16 %v447, %v446
    %v493 = vpack.c.b16 %v449, %v448
    %v494 = vpack.c.b16 %v451, %v450
    %v495 = vpack.c.b16 %v453, %v452
    %v496 = vpack.c.b16 %v455, %v454
    %v497 = vpack.c.b16 %v457, %v456
    %v498 = vpack.c.b16 %v459, %v458
    %v499 = vpack.c.b16 %v461, %v460
    %v500 = vpack.c.b16 %v463, %v462
    %v501 = vpack.c.b16 %v465, %v464
    %v502 = vpack.c.b16 %v467, %v466
    %v503 = vpack.c.b16 %v469, %v468
    %v504 = vpack.c.b16 %v471, %v470
    %v505 = vpack.c.b16 %v473, %v472
    %538 = vmatprep.subr.bf16.mxu0 0
    %539 = vmatpush1.bf16.msra.mxu0 %v474
    %540 = vmatprep.subr.bf16.mxu0 0
    %541 = vmatpush1.bf16.msra.mxu0 %v475
    %542 = vmatprep.subr.bf16.mxu0 0
    %543 = vmatpush1.bf16.msra.mxu0 %v476
    %544 = vmatprep.subr.bf16.mxu0 0
    %545 = vmatpush1.bf16.msra.mxu0 %v477
    %546 = vmatprep.subr.bf16.mxu0 0
    %547 = vmatpush1.bf16.msra.mxu0 %v478
    %548 = vmatprep.subr.bf16.mxu0 0
    %549 = vmatpush1.bf16.msra.mxu0 %v479
    %550 = vmatprep.subr.bf16.mxu0 0
    %551 = vmatpush1.bf16.msra.mxu0 %v480
    %552 = vmatprep.subr.bf16.mxu0 0
    %553 = vmatpush1.bf16.msra.mxu0 %v481
    %554 = vmatprep.subr.bf16.mxu0 0
    %555 = vmatpush1.bf16.msra.mxu0 %v482
    %556 = vmatprep.subr.bf16.mxu0 0
    %557 = vmatpush1.bf16.msra.mxu0 %v483
    %558 = vmatprep.subr.bf16.mxu0 0
    %559 = vmatpush1.bf16.msra.mxu0 %v484
    %560 = vmatprep.subr.bf16.mxu0 0
    %561 = vmatpush1.bf16.msra.mxu0 %v485
    %562 = vmatprep.subr.bf16.mxu0 0
    %563 = vmatpush1.bf16.msra.mxu0 %v486
    %564 = vmatprep.subr.bf16.mxu0 0
    %565 = vmatpush1.bf16.msra.mxu0 %v487
    %566 = vmatprep.subr.bf16.mxu0 0
    %567 = vmatpush1.bf16.msra.mxu0 %v488
    %568 = vmatprep.subr.bf16.mxu0 0
    %569 = vmatpush1.bf16.msra.mxu0 %v489
    %570 = vmatprep.mubr.bf16.mxu0 %v272
    %571 = vmatmul.mubr.bf16.gmra.mrb[0].mxu0 %v271
    %v572 = vpop.f32.mrb[0].mxu0
    %v573 = vadd.f32 %v344, %v572
    %v574 = vpop.f32.mrb[0].mxu0
    %v575 = vpop.f32.mrb[0].mxu0
    %v576 = vadd.f32 %v344, %v575
    %v577 = vpop.f32.mrb[0].mxu0
    %578 = vdwg.mxu0
    %579 = vmatprep.subr.bf16.mxu0 0
    %580 = vmatpush1.bf16.msra.mxu0 %v490
    %581 = vmatprep.subr.bf16.mxu0 0
    %582 = vmatpush1.bf16.msra.mxu0 %v491
    %583 = vmatprep.subr.bf16.mxu0 0
    %584 = vmatpush1.bf16.msra.mxu0 %v492
    %585 = vmatprep.subr.bf16.mxu0 0
    %586 = vmatpush1.bf16.msra.mxu0 %v493
    %587 = vmatprep.subr.bf16.mxu0 0
    %588 = vmatpush1.bf16.msra.mxu0 %v494
    %589 = vmatprep.subr.bf16.mxu0 0
    %590 = vmatpush1.bf16.msra.mxu0 %v495
    %591 = vmatprep.subr.bf16.mxu0 0
    %592 = vmatpush1.bf16.msra.mxu0 %v496
    %593 = vmatprep.subr.bf16.mxu0 0
    %594 = vmatpush1.bf16.msra.mxu0 %v497
    %595 = vmatprep.subr.bf16.mxu0 0
    %596 = vmatpush1.bf16.msra.mxu0 %v498
    %597 = vmatprep.subr.bf16.mxu0 0
    %598 = vmatpush1.bf16.msra.mxu0 %v499
    %599 = vmatprep.subr.bf16.mxu0 0
    %600 = vmatpush1.bf16.msra.mxu0 %v500
    %601 = vmatprep.subr.bf16.mxu0 0
    %602 = vmatpush1.bf16.msra.mxu0 %v501
    %603 = vmatprep.subr.bf16.mxu0 0
    %604 = vmatpush1.bf16.msra.mxu0 %v502
    %605 = vmatprep.subr.bf16.mxu0 0
    %606 = vmatpush1.bf16.msra.mxu0 %v503
    %607 = vmatprep.subr.bf16.mxu0 0
    %608 = vmatpush1.bf16.msra.mxu0 %v504
    %609 = vmatprep.subr.bf16.mxu0 0
    %610 = vmatpush1.bf16.msra.mxu0 %v505
    %611 = vmatprep.mubr.bf16.mxu0 %v274
    %612 = vmatmul.mubr.bf16.gmra.mrb[0].mxu0 %v273
    %v613 = vpop.f32.mrb[0].mxu0
    %v614 = vadd.f32 %v573, %v613
    %v615 = vpop.f32.mrb[0].mxu0
    %v616 = vpop.f32.mrb[0].mxu0
    %v617 = vadd.f32 %v576, %v616
    %v618 = vpop.f32.mrb[0].mxu0
    %619 = vdwg.mxu0
    %v620 = vxor.u32 %v614, 2147483648
    %v621 = vxor.u32 %v617, 2147483648
    %v622 = vmul.f32 %v620, 1.442695
    %v623 = vpow.pop %v622
    %v624 = vmul.f32 %v621, 1.442695
    %v625 = vpow.pop %v624
    %v626 = vadd.f32 %v623, 1.0
    %v627 = vadd.f32 %v625, 1.0
    %v628 = vrcp.pop %v626
    %v629 = vmul.f32 1.0, %v628
    %v630 = vrcp.pop %v627
    %v631 = vmul.f32 1.0, %v630
    %vm632 = vcmask 130048
    %633 = vst.msk [vmem:[#allocation2] sm:$0xff] %vm632, %v629
    %634 = vst.msk [vmem:[#allocation2 + $0x8] sm:$0xff] %vm632, %v631
    // Predicated region
    $region22: #{projmod_forward.1} parent=1 // pred_check
      _
    $region23: #{projmod_forward.1} parent=1 // pred_check_branch
      %636 = sbr.rel (0) target = $region25
    $region24: #{projmod_forward.1} parent=1 // pred_region
      %s638 = ssub.s32 256, 256
      %639 = vsyncadd [#allocation3], %s638
      %s640 = sshll.u32 [#allocation2], 4
      %s641 = int_to_ptr.vmem [resolvable:$true] %s640
      %646 = dma.vmem_to_hbm [thread:$0]  %s641, 256, %s5, [#allocation3], 128, 128, 8
    $region25: #{projmod_forward.1} parent=1 // pred_fallthru
      _
    // Predicated region
    $region26: #{projmod_forward.1} parent=1 // pred_check
      _
    $region27: #{projmod_forward.1} parent=1 // pred_check_branch
      %648 = sbr.rel (0) target = $region29
    $region28: #{projmod_forward.1} parent=1 // pred_region
      %649 = dma.done [#allocation3], 256
    $region29: #{projmod_forward.1} parent=1 // pred_fallthru
      _
    %650 = vsyncpa [#allocation3], 1

</llo_original>
